<compile_context>
chip_gen: v7x
topology: tpu7x:2x2x1
jax: 0.10.0
libtpu: 0.0.40
codegen_flags: <defaults>
</compile_context>

<pallas_src>
import math

import jax
import jax.numpy as jnp
import numpy as np
from jax.experimental import pallas as pl
from jax.experimental.pallas import tpu as pltpu

_LANE = 128


def _round_up(x, m):
    return ((x + m - 1) // m) * m


def _make_bce_kernel(tile_rows):
    """BCE partial-sum kernel. grid = (num_cores, steps_per_core)."""

    def kernel(real_ref, fake_ref, out_ref, acc_ref):
        i = pl.program_id(1)

        # Reset the per-core accumulator at the start of each core's row range.
        @pl.when(i == 0)
        def _():
            acc_ref[...] = jnp.zeros_like(acc_ref)

        real = real_ref[...]
        fake = fake_ref[...]
        # PyTorch binary_cross_entropy clamps each log term at -100.
        log_f = jnp.maximum(jnp.log(fake), -100.0)
        log_1mf = jnp.maximum(jnp.log(1.0 - fake), -100.0)
        # -(real*log_f + (1-real)*log_1mf) == -(log_1mf + real*(log_f - log_1mf))
        acc_ref[...] += -(log_1mf + real * (log_f - log_1mf))

        # One sublane-group reduce per core, written as an (8,128) partial.
        @pl.when(i == pl.num_programs(1) - 1)
        def _():
            partial = acc_ref[...].reshape(tile_rows // 8, 8, _LANE).sum(axis=0)
            out_ref[...] = partial[None]

    return kernel


def global_mask_vae_triplet_loss(real_data, fake_data, mean, logvar,
                                 triplet_data, mask_w, mask_b, *,
                                 kl_beta=1.0, triplet_beta=1.0,
                                 mask_regularization_beta=0.0,
                                 triplet_margin=1.0, tile_rows=2048,
                                 num_cores=2):
    """JAX/Pallas equivalent of GlobalMaskVAETripletLoss.forward.

    triplet_data: tuple (anchor, positive, negative); each element is a stacked
    (mu, logvar)-style tensor so `x[0]` selects the (B, D) mu, matching the
    PyTorch `anchor[0]` indexing.
    Returns (final_loss, triplet_error, recon_error, kl_divergence_error).
    """
    if mask_regularization_beta is None:
        mask_regularization_beta = 0.0

    total = int(np.prod(real_data.shape))
    n_recon = float(total)

    # ---- choose tiling: big lane-dense blocks, multiple of 8 sublanes ----
    rows = -(-total // _LANE)
    tr = min(int(tile_rows), _round_up(rows, 8))
    tr = max(8, (tr // 8) * 8)
    rows_padded = _round_up(rows, tr * num_cores)
    steps_per_core = rows_padded // (tr * num_cores)

    # Pad with (real=1, fake=1) which contributes exactly zero BCE:
    #   -(1*log(1) + 0*max(log(0), -100)) == 0.
    pad = rows_padded * _LANE - total
    real_flat = real_data.reshape(-1).astype(jnp.float32)
    fake_flat = fake_data.reshape(-1).astype(jnp.float32)
    if pad:
        ones = jnp.ones((pad,), jnp.float32)
        real_flat = jnp.concatenate([real_flat, ones])
        fake_flat = jnp.concatenate([fake_flat, ones])
    real2d = real_flat.reshape(rows_padded, _LANE)
    fake2d = fake_flat.reshape(rows_padded, _LANE)

    kernel = _make_bce_kernel(tr)

    partials = pl.pallas_call(
        kernel,
        out_shape=jax.ShapeDtypeStruct((num_cores, 8, _LANE), jnp.float32),
        grid_spec=pltpu.PrefetchScalarGridSpec(
            num_scalar_prefetch=0,
            grid=(num_cores, steps_per_core),
            in_specs=[
                pl.BlockSpec((tr, _LANE),
                             lambda c, i: (c * steps_per_core + i, 0)),
                pl.BlockSpec((tr, _LANE),
                             lambda c, i: (c * steps_per_core + i, 0)),
            ],
            out_specs=pl.BlockSpec((1, 8, _LANE), lambda c, i: (c, 0, 0)),
            scratch_shapes=[pltpu.VMEM((tr, _LANE), jnp.float32)],
        ),
        compiler_params=pltpu.CompilerParams(
            dimension_semantics=("parallel", "arbitrary"),
            vmem_limit_bytes=32 * 1024 * 1024),
    )(real2d, fake2d)

    recon = jnp.sum(partials) / n_recon

    # ---- tiny epilogue in plain JAX (<1 KiB of data, negligible vs. BCE) ----
    mean_f = mean.astype(jnp.float32)
    logvar_f = logvar.astype(jnp.float32)
    kl = -0.5 * jnp.mean(1.0 + logvar_f - mean_f ** 2 - jnp.exp(logvar_f))

    D = mask_b.shape[-1]
    # nn.Linear(1, D) applied to [1.0]  ->  W[:, 0] + b, then Softmax.
    mask_vec = jax.nn.softmax(mask_w.reshape(D).astype(jnp.float32)
                              + mask_b.reshape(D).astype(jnp.float32))

    if triplet_beta != 0.0:
        anchor, positive, negative = triplet_data
        a = anchor[0].astype(jnp.float32) * mask_vec
        p = positive[0].astype(jnp.float32) * mask_vec
        n = negative[0].astype(jnp.float32) * mask_vec
        eps = 1e-6  # torch pairwise_distance adds eps to the difference
        d_ap = jnp.sqrt(jnp.sum((a - p + eps) ** 2, axis=-1))
        d_an = jnp.sqrt(jnp.sum((a - n + eps) ** 2, axis=-1))
        trip = jnp.mean(jnp.maximum(d_ap - d_an + triplet_margin, 0.0))
    else:
        # Matches PyTorch forward: triplet_error = 0 when triplet_beta == 0.
        trip = jnp.float32(0.0)

    mask_reg = jnp.sum(jnp.abs(mask_vec))

    final = (recon + kl_beta * kl + triplet_beta * trip
             + mask_regularization_beta * mask_reg)
    return final, trip, recon, kl


if __name__ == "__main__":
    key = jax.random.PRNGKey(0)
    ks = jax.random.split(key, 8)

    B, C, H, W = 2, 4, 16, 16      # reconstruction tensors (NCHW)
    Bz, latent_dim = 4, 2          # latent batch / latent dim

    real = jax.random.uniform(ks[0], (B, C, H, W), jnp.float32)
    fake = jax.nn.sigmoid(jax.random.normal(ks[1], (B, C, H, W), jnp.float32))
    mean = jax.random.normal(ks[2], (Bz, latent_dim), jnp.float32)
    logvar = 0.1 * jax.random.normal(ks[3], (Bz, latent_dim), jnp.float32)
    anchor = jax.random.normal(ks[4], (2, Bz, latent_dim), jnp.float32)
    positive = jax.random.normal(ks[5], (2, Bz, latent_dim), jnp.float32)
    negative = jax.random.normal(ks[6], (2, Bz, latent_dim), jnp.float32)

    # Deterministic init for nn.Linear(1, latent_dim)
    wk, bk = jax.random.split(ks[7])
    mask_w = jax.random.uniform(wk, (latent_dim, 1), jnp.float32, -1.0, 1.0)
    mask_b = jax.random.uniform(bk, (latent_dim,), jnp.float32, -1.0, 1.0)

    out = global_mask_vae_triplet_loss(
        real, fake, mean, logvar, (anchor, positive, negative),
        mask_w, mask_b,
        kl_beta=1.0, triplet_beta=1.0, mask_regularization_beta=0.0,
        triplet_margin=1.0)
    out = jax.block_until_ready(out)

    # Pure-JAX reference of the PyTorch forward semantics
    def reference():
        a, p, n = anchor[0], positive[0], negative[0]
        mv = jax.nn.softmax(mask_w[:, 0] + mask_b)
        eps = 1e-6
        d_ap = jnp.sqrt(jnp.sum((mv * a - mv * p + eps) ** 2, axis=-1))
        d_an = jnp.sqrt(jnp.sum((mv * a - mv * n + eps) ** 2, axis=-1))
        trip = jnp.mean(jnp.maximum(d_ap - d_an + 1.0, 0.0))
        recon = jnp.mean(-(real * jnp.maximum(jnp.log(fake), -100.0)
                           + (1.0 - real) * jnp.maximum(jnp.log(1.0 - fake),
                                                        -100.0)))
        kl = -0.5 * jnp.mean(1.0 + logvar - mean ** 2 - jnp.exp(logvar))
        mask_reg = jnp.sum(jnp.abs(mv))
        final = recon + 1.0 * kl + 1.0 * trip + 0.0 * mask_reg
        return final, trip, recon, kl

    ref = reference()
    for got, want in zip(out, ref):
        np.testing.assert_allclose(np.asarray(got), np.asarray(want),
                                   rtol=1e-5, atol=1e-5)
    print("KERNEL_OK")
</pallas_src>

<mosaic_0001>
module attributes {stable_mosaic.version = 11 : i64} {
  func.func @kernel(%arg0: i32, %arg1: i32, %arg2: memref<16x128xf32, #tpu.memory_space<vmem>>, %arg3: memref<16x128xf32, #tpu.memory_space<vmem>>, %arg4: memref<1x8x128xf32, #tpu.memory_space<vmem>>, %arg5: memref<16x128xf32, #tpu.memory_space<vmem>>) attributes {dimension_semantics = [#tpu.dimension_semantics<parallel>, #tpu.dimension_semantics<arbitrary>], iteration_bounds = array<i64: 2, 1>, scalar_prefetch = 0 : i64, scratch_operands = 1 : i64, tpu.core_type = #tpu.core_type<tc>, window_params = [{transform_indices = @transform_0, window_bounds = array<i64: 16, 128>}, {transform_indices = @transform_1, window_bounds = array<i64: 16, 128>}, {transform_indices = @transform_2, window_bounds = array<i64: 1, 8, 128>}]} {
    %c0_i32 = arith.constant 0 : i32
    %0 = arith.cmpi eq, %arg1, %c0_i32 : i32
    %1 = arith.extui %0 : i1 to i32
    %c0_i32_0 = arith.constant 0 : i32
    %2 = arith.cmpi ne, %1, %c0_i32_0 : i32
    scf.if %2 {
      %cst_13 = arith.constant 0.000000e+00 : f32
      %24 = vector.broadcast %cst_13 : f32 to vector<16x128xf32>
      %c0_14 = arith.constant 0 : index
      %c0_15 = arith.constant 0 : index
      %25 = vector.load %arg5[%c0_14, %c0_15] : memref<16x128xf32, #tpu.memory_space<vmem>>, vector<16x128xf32>
      tpu.vector_store %arg5[%c0_14, %c0_15], %24 {strides = array<i32>} : memref<16x128xf32, #tpu.memory_space<vmem>>, vector<16x128xf32>,
    } else {
    }
    %c0 = arith.constant 0 : index
    %c0_1 = arith.constant 0 : index
    %3 = vector.load %arg2[%c0, %c0_1] : memref<16x128xf32, #tpu.memory_space<vmem>>, vector<16x128xf32>
    %c0_2 = arith.constant 0 : index
    %c0_3 = arith.constant 0 : index
    %4 = vector.load %arg3[%c0_2, %c0_3] : memref<16x128xf32, #tpu.memory_space<vmem>>, vector<16x128xf32>
    %5 = math.log %4 : vector<16x128xf32>
    %cst = arith.constant -1.000000e+02 : f32
    %6 = vector.broadcast %cst : f32 to vector<16x128xf32>
    %7 = arith.maximumf %5, %6 : vector<16x128xf32>
    %cst_4 = arith.constant 1.000000e+00 : f32
    %8 = vector.broadcast %cst_4 : f32 to vector<16x128xf32>
    %9 = arith.subf %8, %4 : vector<16x128xf32>
    %10 = math.log %9 : vector<16x128xf32>
    %cst_5 = arith.constant -1.000000e+02 : f32
    %11 = vector.broadcast %cst_5 : f32 to vector<16x128xf32>
    %12 = arith.maximumf %10, %11 : vector<16x128xf32>
    %c0_6 = arith.constant 0 : index
    %c0_7 = arith.constant 0 : index
    %13 = vector.load %arg5[%c0_6, %c0_7] : memref<16x128xf32, #tpu.memory_space<vmem>>, vector<16x128xf32>
    %14 = arith.subf %7, %12 : vector<16x128xf32>
    %15 = arith.mulf %3, %14 : vector<16x128xf32>
    %16 = arith.addf %12, %15 : vector<16x128xf32>
    %cst_8 = arith.constant 0.000000e+00 : f32
    %17 = vector.broadcast %cst_8 : f32 to vector<16x128xf32>
    %18 = arith.subf %17, %16 : vector<16x128xf32>
    %19 = arith.addf %13, %18 : vector<16x128xf32>
    %c0_9 = arith.constant 0 : index
    %c0_10 = arith.constant 0 : index
    %20 = vector.load %arg5[%c0_9, %c0_10] : memref<16x128xf32, #tpu.memory_space<vmem>>, vector<16x128xf32>
    tpu.vector_store %arg5[%c0_9, %c0_10], %19 {strides = array<i32>} : memref<16x128xf32, #tpu.memory_space<vmem>>, vector<16x128xf32>,
    %c0_i32_11 = arith.constant 0 : i32
    %21 = arith.cmpi eq, %arg1, %c0_i32_11 : i32
    %22 = arith.extui %21 : i1 to i32
    %c0_i32_12 = arith.constant 0 : i32
    %23 = arith.cmpi ne, %22, %c0_i32_12 : i32
    scf.if %23 {
      %c0_13 = arith.constant 0 : index
      %c0_14 = arith.constant 0 : index
      %24 = vector.load %arg5[%c0_13, %c0_14] : memref<16x128xf32, #tpu.memory_space<vmem>>, vector<16x128xf32>
      %25 = vector.shape_cast %24 : vector<16x128xf32> to vector<2x8x128xf32>
      %cst_15 = arith.constant dense<0.000000e+00> : vector<8x128xf32>
      %26 = vector.multi_reduction <add>, %25, %cst_15 [0] : vector<2x8x128xf32> to vector<8x128xf32>
      %27 = vector.shape_cast %26 : vector<8x128xf32> to vector<1x8x128xf32>
      %c0_16 = arith.constant 0 : index
      %c0_17 = arith.constant 0 : index
      %c0_18 = arith.constant 0 : index
      %28 = vector.load %arg4[%c0_16, %c0_17, %c0_18] : memref<1x8x128xf32, #tpu.memory_space<vmem>>, vector<1x8x128xf32>
      tpu.vector_store %arg4[%c0_16, %c0_17, %c0_18], %27 {strides = array<i32>} : memref<1x8x128xf32, #tpu.memory_space<vmem>>, vector<1x8x128xf32>,
    } else {
    }
    return
  }
  func.func @transform_0(%arg0: i32, %arg1: i32) -> (i32, i32) {
    %c1_i32 = arith.constant 1 : i32
    %0 = arith.muli %arg0, %c1_i32 : i32
    %1 = arith.addi %0, %arg1 : i32
    %c0_i32 = arith.constant 0 : i32
    %c0_i32_0 = arith.constant 0 : i32
    return %1, %c0_i32 : i32, i32
  }
  func.func @transform_1(%arg0: i32, %arg1: i32) -> (i32, i32) {
    %c1_i32 = arith.constant 1 : i32
    %0 = arith.muli %arg0, %c1_i32 : i32
    %1 = arith.addi %0, %arg1 : i32
    %c0_i32 = arith.constant 0 : i32
    %c0_i32_0 = arith.constant 0 : i32
    return %1, %c0_i32 : i32, i32
  }
  func.func @transform_2(%arg0: i32, %arg1: i32) -> (i32, i32, i32) {
    %c0_i32 = arith.constant 0 : i32
    %c0_i32_0 = arith.constant 0 : i32
    %c0_i32_1 = arith.constant 0 : i32
    return %arg0, %c0_i32, %c0_i32_0 : i32, i32, i32
  }
}

</mosaic_0001>

<llo_original>
// kernel: tpu_custom_call.1
$region0: #{tpu_custom_call.1}
  #allocation0 [shape = 'u32[]', space=smem, size = 0x4, offset = 0x4, fixed_abs, tag = 'smem constant byte address 0x4 - core index']
  #allocation1 [shape = 'u32[144,128]{1,0:T(1,128)}', space=vmem, size = 0x12000, scoped, tag = 'internal scratch']
  #allocation2 [shape = 'f32[16,128]{1,0:T(8,128)}', space=vmem, size = 0x2000, scoped, tag = 'scratch operand']
  %s0 = inlined_call_operand.hbm [shape: f32[32,128], index: 0, kind: input, shape index: {}]
  %s1 = inlined_call_operand.hbm [shape: f32[32,128], index: 1, kind: input, shape index: {}]
  %s2 = inlined_call_operand.hbm [shape: f32[2,8,128], index: 2, kind: output, shape index: {}]
  %s3 = sld [smem:[#allocation0]]
  $region57: #{tpu_custom_call.1} parent=0
    _
  %s5 = ssub.s32 1, %s3
  %s6 = scalar_select 0, %s5, %s3
  $region1: #{tpu_custom_call.1} parent=0
    #allocation3 [shape = 'u8[16384]{0}', space=vmem, size = 0x4000, scoped, tag = 'input window, operand 0']
    #allocation4 [shape = 's32[2]{0}', space=sflag, size = 0x8, scoped, tag = 'scoped memory for tpu_custom_call.1']
    #allocation5 [shape = 's32[2]{0}', space=sflag, size = 0x8, scoped, tag = 'scoped memory for tpu_custom_call.1']
    #allocation6 [shape = 'u8[16384]{0}', space=vmem, size = 0x4000, scoped, tag = 'input window, operand 1']
    #allocation7 [shape = 's32[2]{0}', space=sflag, size = 0x8, scoped, tag = 'scoped memory for tpu_custom_call.1']
    #allocation8 [shape = 'u8[8192]{0}', space=vmem, size = 0x2000, scoped, tag = 'output window, operand 0']
    %7 = vsyncpa [#allocation4], 0
    %s8 = scalar_lea.sflag [#allocation4], 1
    %9 = vsyncpa %s8, 0
    %10 = vsyncpa [#allocation7], 0
    %s11 = scalar_lea.sflag [#allocation7], 1
    %12 = vsyncpa %s11, 0
    %13 = vsyncpa [#allocation5], 0
    %s14 = scalar_lea.sflag [#allocation5], 1
    %15 = vsyncpa %s14, 0
    loop: start=0, step=1, limit=4
    $region2: #{tpu_custom_call.1} parent=1 // loop_pre_header
      _
    $region3: #{tpu_custom_call.1} parent=1 // loop_header
      %s17 = sphi 0, %s21
      %p18 = scmp.ge.s32.totalorder %s17, 4
      %s24 = sphi 0, %s36
      %s25 = sphi 0, %s32
      %s26 = sphi 0, %s24
      %s27 = sphi 0, %s25
      %s28 = sphi 0, %s26
      %s29 = sphi 0, %s27
      %s41 = sphi 0, %s43
      %s44 = sphi 0, %s41
      %s45 = sphi 0, %s44
      %s61 = sphi 0, %s45
      %s69 = sphi 0, %s71
      %s72 = sphi 0, %s69
      %s73 = sphi 0, %s72
      %s89 = sphi 0, %s73
      %s95 = sphi 0, %s97
      %s98 = sphi 0, %s95
      %s99 = sphi 0, %s98
      %s115 = sphi 0, %s99
    $region4: #{tpu_custom_call.1} parent=1 // loop_header_branch
      %20 = sbr.rel (%p18) target = $region8
    $region5: #{tpu_custom_call.1} parent=1 // loop_body
      %s22 = ssub.s32 %s17, 1
      %s23 = ssub.s32 %s17, 2
      %s30 = sadd.s32 1, %s25
      %p31 = scmp.ge.s32.totalorder %s30, 1
      %s32 = scalar_select %p31, 0, %s30
      %s33 = sadd.s32 1, %s24
      %s34 = scalar_select %p31, %s33, %s24
      %p35 = scmp.ge.s32.totalorder %s34, 2
      %s36 = scalar_select %p35, 0, %s34
      %s37 = sadd.s32 %s24, %s25
      %s38 = sadd.s32 %s36, %s32
      %s39 = ssub.s32 %s37, %s38
      %p40 = scmp.eq.s32.totalorder %s39, 0
      %s42 = sadd.s32 %s41, 1
      %s43 = scalar_select %p40, %s41, %s42
      %p46 = pneg %p40
      %p47 = scmp.eq.s32.totalorder %s17, 1
      %p48 = por %p46, %p47
      %p49 = scmp.ne.s32.totalorder %s41, %s44
      %p50 = scmp.eq.s32.totalorder %s17, 0
      %p51 = por %p49, %p50
      %p52 = scmp.ne.s32.totalorder %s41, %s44
      %p53 = scmp.eq.s32.totalorder %s22, 1
      %p54 = por %p52, %p53
      %p55 = scmp.ne.s32.totalorder %s44, %s45
      %p56 = scmp.eq.s32.totalorder %s22, 0
      %p57 = por %p55, %p56
      %p58 = scmp.ne.s32.totalorder %s44, %s45
      %p59 = scmp.eq.s32.totalorder %s23, 1
      %p60 = por %p58, %p59
      %p62 = scmp.ne.s32.totalorder %s45, %s61
      %p63 = scmp.eq.s32.totalorder %s23, 0
      %p64 = por %p62, %p63
      %s65 = sadd.s32 %s24, %s25
      %s66 = sadd.s32 %s36, %s32
      %s67 = ssub.s32 %s65, %s66
      %p68 = scmp.eq.s32.totalorder %s67, 0
      %s70 = sadd.s32 %s69, 1
      %s71 = scalar_select %p68, %s69, %s70
      %p74 = pneg %p68
      %p75 = scmp.eq.s32.totalorder %s17, 1
      %p76 = por %p74, %p75
      %p77 = scmp.ne.s32.totalorder %s69, %s72
      %p78 = scmp.eq.s32.totalorder %s17, 0
      %p79 = por %p77, %p78
      %p80 = scmp.ne.s32.totalorder %s69, %s72
      %p81 = scmp.eq.s32.totalorder %s22, 1
      %p82 = por %p80, %p81
      %p83 = scmp.ne.s32.totalorder %s72, %s73
      %p84 = scmp.eq.s32.totalorder %s22, 0
      %p85 = por %p83, %p84
      %p86 = scmp.ne.s32.totalorder %s72, %s73
      %p87 = scmp.eq.s32.totalorder %s23, 1
      %p88 = por %p86, %p87
      %p90 = scmp.ne.s32.totalorder %s73, %s89
      %p91 = scmp.eq.s32.totalorder %s23, 0
      %p92 = por %p90, %p91
      %s93 = ssub.s32 %s24, %s36
      %p94 = scmp.eq.s32.totalorder %s93, 0
      %s96 = sadd.s32 %s95, 1
      %s97 = scalar_select %p94, %s95, %s96
      %p100 = pneg %p94
      %p101 = scmp.eq.s32.totalorder %s17, 1
      %p102 = por %p100, %p101
      %p103 = scmp.ne.s32.totalorder %s95, %s98
      %p104 = scmp.eq.s32.totalorder %s17, 0
      %p105 = por %p103, %p104
      %p106 = scmp.ne.s32.totalorder %s95, %s98
      %p107 = scmp.eq.s32.totalorder %s22, 1
      %p108 = por %p106, %p107
      %p109 = scmp.ne.s32.totalorder %s98, %s99
      %p110 = scmp.eq.s32.totalorder %s22, 0
      %p111 = por %p109, %p110
      %p112 = scmp.ne.s32.totalorder %s98, %s99
      %p113 = scmp.eq.s32.totalorder %s23, 1
      %p114 = por %p112, %p113
      %p116 = scmp.ne.s32.totalorder %s99, %s115
      %p117 = scmp.eq.s32.totalorder %s23, 0
      %p118 = por %p116, %p117
      %p119 = scmp.le.s32.totalorder 1, %s17
      %p120 = scmp.lt.s32.totalorder %s17, 3
      %p121 = pnand %p119, %p120
      %p122 = pneg %p121
      // Predicated region
      $region9: #{tpu_custom_call.1} parent=5 // pred_check
        _
      $region10: #{tpu_custom_call.1} parent=5 // pred_check_branch
        %124 = sbr.rel (%p121) target = $region12
      $region11: #{tpu_custom_call.1} parent=5 // pred_region
        %s125 = ssub.s32 %s17, 1
      $region12: #{tpu_custom_call.1} parent=5 // pred_fallthru
        _
      %p126 = scmp.lt.s32.totalorder %s17, 2
      // Predicated region
      $region13: #{tpu_custom_call.1} parent=5 // pred_check
        %p127 = pneg %p126
      $region14: #{tpu_custom_call.1} parent=5 // pred_check_branch
        %129 = sbr.rel (%p127) target = $region16
      $region15: #{tpu_custom_call.1} parent=5 // pred_region
        // Predicated region
        $region17: #{tpu_custom_call.1} parent=15 // pred_check
          %p130 = pneg %p51
        $region18: #{tpu_custom_call.1} parent=15 // pred_check_branch
          %132 = sbr.rel (%p130) target = $region20
        $region19: #{tpu_custom_call.1} parent=15 // pred_region
          %s133 = sand.u32 %s41, 1
          %s134 = scalar_lea.sflag [#allocation4], %s133
          %s135 = sand.u32 %s41, 1
          %s136 = smul.addr %s135, 16
          %s137 = scalar_lea.vmem [#allocation3], %s136
          %s138 = sadd.s32 %s24, %s25
          %s139 = smul.u32 2, %s138
          %s141 = ssub.s32 256, 256
          %142 = vsyncadd %s134, %s141
          %s143 = smul.addr %s139, 128
          %s144 = scalar_lea.hbm %s0, %s143
          %s145 = sshll.u32 %s137, 4
          %s146 = int_to_ptr.vmem [resolvable:$true] %s145
          %151 = dma.hbm_to_vmem [thread:$0]  %s144, 256, %s146, %s134, 128, 128, 8
        $region20: #{tpu_custom_call.1} parent=15 // pred_fallthru
          _
        // Predicated region
        $region21: #{tpu_custom_call.1} parent=15 // pred_check
          %p152 = pneg %p79
        $region22: #{tpu_custom_call.1} parent=15 // pred_check_branch
          %154 = sbr.rel (%p152) target = $region24
        $region23: #{tpu_custom_call.1} parent=15 // pred_region
          %s155 = sand.u32 %s69, 1
          %s156 = scalar_lea.sflag [#allocation7], %s155
          %s157 = sand.u32 %s69, 1
          %s158 = smul.addr %s157, 16
          %s159 = scalar_lea.vmem [#allocation6], %s158
          %s160 = sadd.s32 %s24, %s25
          %s161 = smul.u32 2, %s160
          %s163 = ssub.s32 256, 256
          %164 = vsyncadd %s156, %s163
          %s165 = smul.addr %s161, 128
          %s166 = scalar_lea.hbm %s1, %s165
          %s167 = sshll.u32 %s159, 4
          %s168 = int_to_ptr.vmem [resolvable:$true] %s167
          %173 = dma.hbm_to_vmem [thread:$0]  %s166, 256, %s168, %s156, 128, 128, 8
        $region24: #{tpu_custom_call.1} parent=15 // pred_fallthru
          _
      $region16: #{tpu_custom_call.1} parent=5 // pred_fallthru
        _
      %p174 = scmp.le.s32.totalorder 1, %s17
      %p175 = scmp.lt.s32.totalorder %s17, 3
      %p176 = pnand %p174, %p175
      %p177 = pneg %p176
      // Predicated region
      $region25: #{tpu_custom_call.1} parent=5 // pred_check
        _
      $region26: #{tpu_custom_call.1} parent=5 // pred_check_branch
        %179 = sbr.rel (%p176) target = $region28
      $region27: #{tpu_custom_call.1} parent=5 // pred_region
        %s180 = ssub.s32 %s17, 1
        %s181 = sand.u32 %s44, 1
        %s182 = scalar_lea.sflag [#allocation4], %s181
        %s183 = sand.u32 %s44, 1
        %s184 = smul.addr %s183, 16
        %s185 = scalar_lea.vmem [#allocation3], %s184
        // Predicated region
        $region29: #{tpu_custom_call.1} parent=27 // pred_check
          %p186 = pneg %p57
        $region30: #{tpu_custom_call.1} parent=27 // pred_check_branch
          %188 = sbr.rel (%p186) target = $region32
        $region31: #{tpu_custom_call.1} parent=27 // pred_region
          %189 = dma.done %s182, 256
        $region32: #{tpu_custom_call.1} parent=27 // pred_fallthru
          _
        %s190 = sand.u32 %s72, 1
        %s191 = scalar_lea.sflag [#allocation7], %s190
        %s192 = sand.u32 %s72, 1
        %s193 = smul.addr %s192, 16
        %s194 = scalar_lea.vmem [#allocation6], %s193
        // Predicated region
        $region33: #{tpu_custom_call.1} parent=27 // pred_check
          %p195 = pneg %p85
        $region34: #{tpu_custom_call.1} parent=27 // pred_check_branch
          %197 = sbr.rel (%p195) target = $region36
        $region35: #{tpu_custom_call.1} parent=27 // pred_region
          %198 = dma.done %s191, 256
        $region36: #{tpu_custom_call.1} parent=27 // pred_fallthru
          _
        %s199 = sand.u32 %s44, 1
        %s200 = scalar_lea.sflag [#allocation4], %s199
        %s201 = sand.u32 %s44, 1
        %s202 = smul.addr %s201, 16
        %s203 = scalar_lea.vmem [#allocation3], %s202
        %p204 = pneg %p57
        %p205 = pneg %p54
        %s206 = sand.u32 %s72, 1
        %s207 = scalar_lea.sflag [#allocation7], %s206
        %s208 = sand.u32 %s72, 1
        %s209 = smul.addr %s208, 16
        %s210 = scalar_lea.vmem [#allocation6], %s209
        %p211 = pneg %p85
        %p212 = pneg %p82
        %p213 = pneg %p111
        %p214 = pneg %p108
        %s215 = sand.u32 %s98, 1
        %s216 = scalar_lea.sflag [#allocation5], %s215
        %s217 = sand.u32 %s98, 1
        %s218 = smul.addr %s217, 8
        %s219 = scalar_lea.vmem [#allocation8], %s218
        %s220 = sadd.s32 %s26, %s27
        %s221 = smul.u32 2, %s220
        %s222 = sadd.s32 %s26, %s27
        %s223 = smul.u32 2, %s222
        %p224 = scmp.eq.s32.totalorder %s27, 0
        // Predicated region
        $region37: #{tpu_custom_call.1} parent=27 // pred_check
          %p225 = pneg %p224
        $region38: #{tpu_custom_call.1} parent=27 // pred_check_branch
          %227 = sbr.rel (%p225) target = $region40
        $region39: #{tpu_custom_call.1} parent=27 // pred_region
          %228 = vst [vmem:[#allocation2] sm:$0xff] 0.0
          %229 = vst [vmem:[#allocation2 + $0x8] sm:$0xff] 0.0
        $region40: #{tpu_custom_call.1} parent=27 // pred_fallthru
          _
        %v230 = vld [vmem:[%s185] sm:$0xff]
        %v231 = vld [vmem:[%s185 + $0x8] sm:$0xff]
        %v232 = vld [vmem:[%s194] sm:$0xff]
        %v233 = vld [vmem:[%s194 + $0x8] sm:$0xff]
        %v234 = vlog2.pop %v232
        %v235 = vmul.f32 %v234, 0.6931472
        %v236 = vlog2.pop %v233
        %v237 = vmul.f32 %v236, 0.6931472
        %v238 = vmax.f32 %v235, -100.0
        %v239 = vmax.f32 %v237, -100.0
        %v240 = vsub.f32 1.0, %v232
        %v241 = vsub.f32 1.0, %v233
        %v242 = vlog2.pop %v240
        %v243 = vmul.f32 %v242, 0.6931472
        %v244 = vlog2.pop %v241
        %v245 = vmul.f32 %v244, 0.6931472
        %v246 = vmax.f32 %v243, -100.0
        %v247 = vmax.f32 %v245, -100.0
        %v248 = vld [vmem:[#allocation2] sm:$0xff]
        %v249 = vld [vmem:[#allocation2 + $0x8] sm:$0xff]
        %v250 = vsub.f32 %v238, %v246
        %v251 = vsub.f32 %v239, %v247
        %v252 = vmul.f32 %v230, %v250
        %v253 = vmul.f32 %v231, %v251
        %v254 = vadd.f32 %v246, %v252
        %v255 = vadd.f32 %v247, %v253
        %v256 = vsub.f32 0.0, %v254
        %v257 = vsub.f32 0.0, %v255
        %v258 = vadd.f32 %v248, %v256
        %v259 = vadd.f32 %v249, %v257
        %260 = vst [vmem:[#allocation2] sm:$0xff] %v258
        %261 = vst [vmem:[#allocation2 + $0x8] sm:$0xff] %v259
        // Predicated region
        $region41: #{tpu_custom_call.1} parent=27 // pred_check
          %p262 = pneg %p224
        $region42: #{tpu_custom_call.1} parent=27 // pred_check_branch
          %264 = sbr.rel (%p262) target = $region44
        $region43: #{tpu_custom_call.1} parent=27 // pred_region
          %v265 = vld [vmem:[#allocation2] sm:$0xff]
          %v266 = vld [vmem:[#allocation2 + $0x8] sm:$0xff]
          %v267 = vadd.f32 %v265, %v266
          %268 = vst [vmem:[%s219] sm:$0xff] %v267
        $region44: #{tpu_custom_call.1} parent=27 // pred_fallthru
          _
        %s269 = sand.u32 %s98, 1
        %s270 = scalar_lea.sflag [#allocation5], %s269
        %s271 = sand.u32 %s98, 1
        %s272 = smul.addr %s271, 8
        %s273 = scalar_lea.vmem [#allocation8], %s272
        // Predicated region
        $region45: #{tpu_custom_call.1} parent=27 // pred_check
          %p274 = pneg %p108
        $region46: #{tpu_custom_call.1} parent=27 // pred_check_branch
          %276 = sbr.rel (%p274) target = $region48
        $region47: #{tpu_custom_call.1} parent=27 // pred_region
          %s278 = ssub.s32 128, 128
          %279 = vsyncadd %s270, %s278
          %s280 = smul.addr %s26, 128
          %s281 = scalar_lea.hbm %s2, %s280
          %s283 = sshll.u32 %s273, 4
          %s284 = int_to_ptr.vmem [resolvable:$true] %s283
          %286 = dma.vmem_to_hbm [thread:$0]  %s284, 128, %s281, %s270
        $region48: #{tpu_custom_call.1} parent=27 // pred_fallthru
          _
      $region28: #{tpu_custom_call.1} parent=5 // pred_fallthru
        _
      %p287 = scmp.le.s32.totalorder 2, %s17
      // Predicated region
      $region49: #{tpu_custom_call.1} parent=5 // pred_check
        %p288 = pneg %p287
      $region50: #{tpu_custom_call.1} parent=5 // pred_check_branch
        %290 = sbr.rel (%p288) target = $region52
      $region51: #{tpu_custom_call.1} parent=5 // pred_region
        %s291 = ssub.s32 %s17, 2
        // Predicated region
        $region53: #{tpu_custom_call.1} parent=51 // pred_check
          %p292 = pneg %p114
        $region54: #{tpu_custom_call.1} parent=51 // pred_check_branch
          %294 = sbr.rel (%p292) target = $region56
        $region55: #{tpu_custom_call.1} parent=51 // pred_region
          %s295 = sand.u32 %s99, 1
          %s296 = scalar_lea.sflag [#allocation5], %s295
          %s297 = sand.u32 %s99, 1
          %s298 = smul.addr %s297, 8
          %s299 = scalar_lea.vmem [#allocation8], %s298
          %300 = dma.done %s296, 128
        $region56: #{tpu_custom_call.1} parent=51 // pred_fallthru
          _
      $region52: #{tpu_custom_call.1} parent=5 // pred_fallthru
        _
    $region6: #{tpu_custom_call.1} parent=1 // loop_footer
      %s21 = sadd.s32 1, %s17
    $region7: #{tpu_custom_call.1} parent=1 // loop_footer_branch
      %16 = sbr.rel target = $region3
    $region8: #{tpu_custom_call.1} parent=1 // loop_exit
      _
    %301 = vsyncpa [#allocation4], 1
    %s302 = scalar_lea.sflag [#allocation4], 1
    %303 = vsyncpa %s302, 1
    %304 = vsyncpa [#allocation7], 1
    %s305 = scalar_lea.sflag [#allocation7], 1
    %306 = vsyncpa %s305, 1
    %307 = vsyncpa [#allocation5], 1
    %s308 = scalar_lea.sflag [#allocation5], 1
    %309 = vsyncpa %s308, 1

</llo_original>
